<compile_context>
chip_gen: v7x
topology: tpu7x:2x2x1
jax: 0.10.0
libtpu: 0.0.40
codegen_flags: <defaults>
</compile_context>

<pallas_src>
import functools

import jax
import jax.numpy as jnp
from jax.experimental import pallas as pl
from jax.experimental.pallas import tpu as pltpu


def _round_up(v, m):
    return (v + m - 1) // m * m


def _vmem_limit(block_bytes, blocks_live):
    need = blocks_live * block_bytes + (8 << 20)
    return int(min(32 << 20, max(16 << 20, need)))


# ----------------------------------------------------------------------------
# Kernel 1: resident single-read variant. One grid step owns a full channel
# row slab (B, tC, S_pad): compute stats and normalize in one visit.
# ----------------------------------------------------------------------------
def _bn_resident_kernel(x_ref, w_ref, b_ref, o_ref, *, eps, inv_n):
    x = x_ref[...].astype(jnp.float32)                      # (B, tC, S_pad)
    s1 = jnp.sum(jnp.sum(x, axis=2, keepdims=True), axis=0, keepdims=True)
    s2 = jnp.sum(jnp.sum(x * x, axis=2, keepdims=True), axis=0, keepdims=True)
    mean = s1 * inv_n                                       # (1, tC, 1)
    var = jnp.maximum(s2 * inv_n - mean * mean, 0.0)
    inv = jax.lax.rsqrt(var + eps)
    scale = w_ref[...].astype(jnp.float32)[None, :, :] * inv
    shift = b_ref[...].astype(jnp.float32)[None, :, :] - mean * scale
    o_ref[...] = (x * scale + shift).astype(o_ref.dtype)


# ----------------------------------------------------------------------------
# Kernel 2: streaming two-pass variant.
# grid = (C/tC, pass in {0,1}, B, S/tS); x block = (tC, tS) (B squeezed).
# ----------------------------------------------------------------------------
def _bn_stream_kernel(x_ref, w_ref, b_ref, o_ref,
                      sum_ref, sq_ref, scale_ref, shift_ref, *, eps, inv_n):
    p = pl.program_id(1)
    first_block = jnp.logical_and(pl.program_id(2) == 0, pl.program_id(3) == 0)

    @pl.when(jnp.logical_and(p == 0, first_block))
    def _init():
        sum_ref[...] = jnp.zeros_like(sum_ref)
        sq_ref[...] = jnp.zeros_like(sq_ref)

    @pl.when(p == 0)
    def _accumulate():
        x = x_ref[...].astype(jnp.float32)                  # (tC, tS)
        sum_ref[...] += jnp.sum(x, axis=1, keepdims=True)
        sq_ref[...] += jnp.sum(x * x, axis=1, keepdims=True)

    @pl.when(jnp.logical_and(p == 1, first_block))
    def _finalize_stats():
        mean = sum_ref[...] * inv_n
        var = jnp.maximum(sq_ref[...] * inv_n - mean * mean, 0.0)
        inv = jax.lax.rsqrt(var + eps)
        scale = w_ref[...].astype(jnp.float32) * inv
        scale_ref[...] = scale
        shift_ref[...] = b_ref[...].astype(jnp.float32) - mean * scale

    @pl.when(p == 1)
    def _normalize():
        x = x_ref[...].astype(jnp.float32)
        o_ref[...] = (x * scale_ref[...] + shift_ref[...]).astype(o_ref.dtype)


# ----------------------------------------------------------------------------
# Wrapper
# ----------------------------------------------------------------------------
_RESIDENT_BLOCK_BUDGET = 2 * 1024 * 1024  # bytes per (B, tC, S_pad) slab


def dummy_layer_norm_ane(x, weight=None, bias=None, *, eps=1e-05,
                         force_two_pass=False):
    """x: (B, C, 1, S) BC1S.  weight/bias: (C,) or None (affine identity)."""
    B, C, H, S = x.shape
    assert H == 1, "expected BC1S input (H == 1)"

    if weight is None:
        weight = jnp.ones((C,), jnp.float32)
    if bias is None:
        bias = jnp.zeros((C,), jnp.float32)

    itemsize = jnp.dtype(x.dtype).itemsize
    C_pad = _round_up(C, 8)
    S_pad = _round_up(S, 128)
    n_true = B * S
    inv_n = 1.0 / float(n_true)

    x3 = x.reshape(B, C, S)                                 # free reshape
    if (C_pad, S_pad) != (C, S):
        x3 = jnp.pad(x3, ((0, 0), (0, C_pad - C), (0, S_pad - S)))
    w2 = weight.astype(jnp.float32).reshape(C, 1)
    b2 = bias.astype(jnp.float32).reshape(C, 1)
    if C_pad != C:
        w2 = jnp.pad(w2, ((0, C_pad - C), (0, 0)), constant_values=1.0)
        b2 = jnp.pad(b2, ((0, C_pad - C), (0, 0)))

    total_elems = B * C_pad * S_pad
    per_ch_bytes = B * S_pad * itemsize

    use_resident = (not force_two_pass) and (8 * per_ch_bytes
                                             <= _RESIDENT_BLOCK_BUDGET)

    if use_resident:
        # ------------------------- resident single-read -------------------
        tC = 8
        while (tC * 2 <= C_pad and C_pad % (tC * 2) == 0
               and (tC * 2) * per_ch_bytes <= _RESIDENT_BLOCK_BUDGET):
            tC *= 2
        block_bytes = B * tC * S_pad * itemsize
        kernel = functools.partial(_bn_resident_kernel, eps=eps, inv_n=inv_n)
        out3 = pl.pallas_call(
            kernel,
            out_shape=jax.ShapeDtypeStruct((B, C_pad, S_pad), x.dtype),
            grid=(C_pad // tC,),
            in_specs=[
                pl.BlockSpec((B, tC, S_pad), lambda c: (0, c, 0)),
                pl.BlockSpec((tC, 1), lambda c: (c, 0)),
                pl.BlockSpec((tC, 1), lambda c: (c, 0)),
            ],
            out_specs=pl.BlockSpec((B, tC, S_pad), lambda c: (0, c, 0)),
            compiler_params=pltpu.CompilerParams(
                dimension_semantics=("parallel",),
                vmem_limit_bytes=_vmem_limit(block_bytes, 8)),
            cost_estimate=pl.CostEstimate(
                flops=7 * total_elems,
                transcendentals=C_pad,
                bytes_accessed=2 * total_elems * itemsize),
        )(x3, w2, b2)
    else:
        # ------------------------- streaming two-pass ---------------------
        tC = 8
        while tC * 2 <= min(C_pad, 64) and C_pad % (tC * 2) == 0:
            tC *= 2
        tS = 128
        while tS * 2 <= min(S_pad, 2048) and S_pad % (tS * 2) == 0:
            tS *= 2
        block_bytes = tC * tS * itemsize
        kernel = functools.partial(_bn_stream_kernel, eps=eps, inv_n=inv_n)
        out3 = pl.pallas_call(
            kernel,
            out_shape=jax.ShapeDtypeStruct((B, C_pad, S_pad), x.dtype),
            grid=(C_pad // tC, 2, B, S_pad // tS),
            in_specs=[
                pl.BlockSpec((None, tC, tS), lambda c, p, b, s: (b, c, s)),
                pl.BlockSpec((tC, 1), lambda c, p, b, s: (c, 0)),
                pl.BlockSpec((tC, 1), lambda c, p, b, s: (c, 0)),
            ],
            # During pass 0 every step maps to one fixed block -> no writeback
            # of unwritten data; pass 1 streams each block exactly once.
            out_specs=pl.BlockSpec((None, tC, tS),
                                   lambda c, p, b, s: (b * p, c, s * p)),
            scratch_shapes=[pltpu.VMEM((tC, 1), jnp.float32)] * 4,
            compiler_params=pltpu.CompilerParams(
                dimension_semantics=("parallel", "arbitrary",
                                     "arbitrary", "arbitrary"),
                vmem_limit_bytes=_vmem_limit(block_bytes, 6)),
            cost_estimate=pl.CostEstimate(
                flops=6 * total_elems,
                transcendentals=C_pad,
                bytes_accessed=3 * total_elems * itemsize),
        )(x3, w2, b2)

    if (C_pad, S_pad) != (C, S):
        out3 = out3[:, :C, :S]
    return out3.reshape(B, C, 1, S)


# ----------------------------------------------------------------------------
# Self-test
# ----------------------------------------------------------------------------
if __name__ == "__main__":
    key = jax.random.PRNGKey(0)

    def reference(x, w, b, eps):
        mean = jnp.mean(x, axis=(0, 2, 3), keepdims=True)
        var = jnp.mean((x - mean) ** 2, axis=(0, 2, 3), keepdims=True)
        y = (x - mean) * jax.lax.rsqrt(var + eps)
        return y * w.reshape(1, -1, 1, 1) + b.reshape(1, -1, 1, 1)

    # Small shape (matches module default expectations) + a slightly larger
    # ragged shape that exercises channel/sequence padding and a multi-tile
    # grid on the streaming path.
    for (B, C, S) in [(2, 4, 16), (3, 24, 300)]:
        kx, kw, kb, key = jax.random.split(key, 4)
        x = jax.random.normal(kx, (B, C, 1, S), dtype=jnp.float32)
        w = 1.0 + 0.1 * jax.random.normal(kw, (C,), dtype=jnp.float32)
        b = 0.1 * jax.random.normal(kb, (C,), dtype=jnp.float32)
        ref = reference(x, w, b, 1e-05)

        for force in (False, True):  # resident path, then streaming two-pass
            out = dummy_layer_norm_ane(x, w, b, eps=1e-05,
                                       force_two_pass=force)
            out = jax.block_until_ready(out)
            assert out.shape == x.shape
            assert jnp.allclose(out, ref, atol=1e-4, rtol=1e-4), (
                f"mismatch vs reference: B={B} C={C} S={S} two_pass={force}")

    print("KERNEL_OK")
</pallas_src>

<mosaic_0001>
module attributes {stable_mosaic.version = 11 : i64} {
  func.func @_bn_resident_kernel(%arg0: i32, %arg1: memref<2x8x128xf32, #tpu.memory_space<vmem>>, %arg2: memref<8x1xf32, #tpu.memory_space<vmem>>, %arg3: memref<8x1xf32, #tpu.memory_space<vmem>>, %arg4: memref<2x8x128xf32, #tpu.memory_space<vmem>>) attributes {dimension_semantics = [#tpu.dimension_semantics<parallel>], iteration_bounds = array<i64: 1>, scalar_prefetch = 0 : i64, scratch_operands = 0 : i64, tpu.core_type = #tpu.core_type<tc>, window_params = [{transform_indices = @transform_0, window_bounds = array<i64: 2, 8, 128>}, {transform_indices = @transform_1, window_bounds = array<i64: 8, 1>}, {transform_indices = @transform_2, window_bounds = array<i64: 8, 1>}, {transform_indices = @transform_3, window_bounds = array<i64: 2, 8, 128>}]} {
    %c0 = arith.constant 0 : index
    %c0_0 = arith.constant 0 : index
    %c0_1 = arith.constant 0 : index
    %0 = vector.load %arg1[%c0, %c0_0, %c0_1] : memref<2x8x128xf32, #tpu.memory_space<vmem>>, vector<2x8x128xf32>
    %cst = arith.constant dense<0.000000e+00> : vector<2x8xf32>
    %1 = vector.multi_reduction <add>, %0, %cst [2] : vector<2x8x128xf32> to vector<2x8xf32>
    %2 = vector.shape_cast %1 : vector<2x8xf32> to vector<2x8x1xf32>
    %cst_2 = arith.constant dense<0.000000e+00> : vector<8x1xf32>
    %3 = vector.multi_reduction <add>, %2, %cst_2 [0] : vector<2x8x1xf32> to vector<8x1xf32>
    %4 = vector.shape_cast %3 : vector<8x1xf32> to vector<1x8x1xf32>
    %5 = arith.mulf %0, %0 : vector<2x8x128xf32>
    %cst_3 = arith.constant dense<0.000000e+00> : vector<2x8xf32>
    %6 = vector.multi_reduction <add>, %5, %cst_3 [2] : vector<2x8x128xf32> to vector<2x8xf32>
    %7 = vector.shape_cast %6 : vector<2x8xf32> to vector<2x8x1xf32>
    %cst_4 = arith.constant dense<0.000000e+00> : vector<8x1xf32>
    %8 = vector.multi_reduction <add>, %7, %cst_4 [0] : vector<2x8x1xf32> to vector<8x1xf32>
    %9 = vector.shape_cast %8 : vector<8x1xf32> to vector<1x8x1xf32>
    %cst_5 = arith.constant 3.125000e-02 : f32
    %10 = vector.broadcast %cst_5 : f32 to vector<1x8x1xf32>
    %11 = arith.mulf %4, %10 : vector<1x8x1xf32>
    %cst_6 = arith.constant 3.125000e-02 : f32
    %12 = vector.broadcast %cst_6 : f32 to vector<1x8x1xf32>
    %13 = arith.mulf %9, %12 : vector<1x8x1xf32>
    %14 = arith.mulf %11, %11 : vector<1x8x1xf32>
    %15 = arith.subf %13, %14 : vector<1x8x1xf32>
    %cst_7 = arith.constant 0.000000e+00 : f32
    %16 = vector.broadcast %cst_7 : f32 to vector<1x8x1xf32>
    %17 = arith.maximumf %15, %16 : vector<1x8x1xf32>
    %cst_8 = arith.constant 9.99999974E-6 : f32
    %18 = vector.broadcast %cst_8 : f32 to vector<1x8x1xf32>
    %19 = arith.addf %17, %18 : vector<1x8x1xf32>
    %20 = math.rsqrt %19 : vector<1x8x1xf32>
    %c0_9 = arith.constant 0 : index
    %c0_10 = arith.constant 0 : index
    %21 = vector.load %arg2[%c0_9, %c0_10] : memref<8x1xf32, #tpu.memory_space<vmem>>, vector<8x1xf32>
    %22 = vector.shape_cast %21 : vector<8x1xf32> to vector<1x8x1xf32>
    %23 = arith.mulf %22, %20 : vector<1x8x1xf32>
    %c0_11 = arith.constant 0 : index
    %c0_12 = arith.constant 0 : index
    %24 = vector.load %arg3[%c0_11, %c0_12] : memref<8x1xf32, #tpu.memory_space<vmem>>, vector<8x1xf32>
    %25 = vector.shape_cast %24 : vector<8x1xf32> to vector<1x8x1xf32>
    %26 = arith.mulf %11, %23 : vector<1x8x1xf32>
    %27 = arith.subf %25, %26 : vector<1x8x1xf32>
    %28 = vector.broadcast %23 : vector<1x8x1xf32> to vector<2x8x128xf32>
    %29 = arith.mulf %0, %28 : vector<2x8x128xf32>
    %30 = vector.broadcast %27 : vector<1x8x1xf32> to vector<2x8x128xf32>
    %31 = arith.addf %29, %30 : vector<2x8x128xf32>
    %c0_13 = arith.constant 0 : index
    %c0_14 = arith.constant 0 : index
    %c0_15 = arith.constant 0 : index
    %32 = vector.load %arg4[%c0_13, %c0_14, %c0_15] : memref<2x8x128xf32, #tpu.memory_space<vmem>>, vector<2x8x128xf32>
    tpu.vector_store %arg4[%c0_13, %c0_14, %c0_15], %31 {strides = array<i32>} : memref<2x8x128xf32, #tpu.memory_space<vmem>>, vector<2x8x128xf32>,
    return
  }
  func.func @transform_0(%arg0: i32) -> (i32, i32, i32) {
    %c0_i32 = arith.constant 0 : i32
    %c0_i32_0 = arith.constant 0 : i32
    %c0_i32_1 = arith.constant 0 : i32
    return %c0_i32, %arg0, %c0_i32_0 : i32, i32, i32
  }
  func.func @transform_1(%arg0: i32) -> (i32, i32) {
    %c0_i32 = arith.constant 0 : i32
    %c0_i32_0 = arith.constant 0 : i32
    return %arg0, %c0_i32 : i32, i32
  }
  func.func @transform_2(%arg0: i32) -> (i32, i32) {
    %c0_i32 = arith.constant 0 : i32
    %c0_i32_0 = arith.constant 0 : i32
    return %arg0, %c0_i32 : i32, i32
  }
  func.func @transform_3(%arg0: i32) -> (i32, i32, i32) {
    %c0_i32 = arith.constant 0 : i32
    %c0_i32_0 = arith.constant 0 : i32
    %c0_i32_1 = arith.constant 0 : i32
    return %c0_i32, %arg0, %c0_i32_0 : i32, i32, i32
  }
}

</mosaic_0001>

<llo_original>
// kernel: tpu_custom_call.1
$region0: #{tpu_custom_call.1}
  #allocation0 [shape = 'u32[]', space=smem, size = 0x4, offset = 0x4, fixed_abs, tag = 'smem constant byte address 0x4 - core index']
  #allocation1 [shape = 'u32[144,128]{1,0:T(1,128)}', space=vmem, size = 0x12000, scoped, tag = 'internal scratch']
  %s0 = inlined_call_operand.vmem [shape: f32[2,8,128], index: 0, kind: input, shape index: {}]
  %s1 = inlined_call_operand.vmem [shape: f32[8,1], index: 1, kind: input, shape index: {}]
  %s2 = inlined_call_operand.vmem [shape: f32[8,1], index: 2, kind: input, shape index: {}]
  %s3 = inlined_call_operand.hbm [shape: f32[2,8,128], index: 3, kind: output, shape index: {}]
  %s4 = sld [smem:[#allocation0]]
  $region22: #{tpu_custom_call.1} parent=0
    _
  %s6 = ssub.s32 1, %s4
  %s7 = scalar_select 0, %s6, %s4
  $region1: #{tpu_custom_call.1} parent=0
    #allocation2 [shape = 'u8[8192]{0}', space=vmem, size = 0x2000, scoped, tag = 'output window, operand 0, single buffered']
    #allocation3 [shape = 's32[1]{0}', space=sflag, size = 0x4, scoped, tag = 'scoped memory for tpu_custom_call.1']
    %8 = vsyncpa [#allocation3], 0
    // Predicated region
    $region2: #{tpu_custom_call.1} parent=1 // pred_check
      _
    $region3: #{tpu_custom_call.1} parent=1 // pred_check_branch
      %10 = sbr.rel (0) target = $region5
    $region4: #{tpu_custom_call.1} parent=1 // pred_region
      _
    $region5: #{tpu_custom_call.1} parent=1 // pred_fallthru
      _
    // Predicated region
    $region6: #{tpu_custom_call.1} parent=1 // pred_check
      _
    $region7: #{tpu_custom_call.1} parent=1 // pred_check_branch
      %12 = sbr.rel (0) target = $region9
    $region8: #{tpu_custom_call.1} parent=1 // pred_region
      _
    $region9: #{tpu_custom_call.1} parent=1 // pred_fallthru
      _
    // Predicated region
    $region10: #{tpu_custom_call.1} parent=1 // pred_check
      _
    $region11: #{tpu_custom_call.1} parent=1 // pred_check_branch
      %14 = sbr.rel (0) target = $region13
    $region12: #{tpu_custom_call.1} parent=1 // pred_region
      _
    $region13: #{tpu_custom_call.1} parent=1 // pred_fallthru
      _
    %v15 = vld [vmem:[%s0] sm:$0xff]
    %v16 = vld [vmem:[%s0 + $0x8] sm:$0xff]
    %17 = vadd.xlane.f32.xlu0 %v15
    %v18 = vpop.xlane.xlu0 %17
    %19 = vadd.xlane.f32.xlu0 %v16
    %v20 = vpop.xlane.xlu0 %19
    %v21 = vadd.f32 %v18, %v20
    %v22 = vmul.f32 %v15, %v15
    %v23 = vmul.f32 %v16, %v16
    %24 = vadd.xlane.f32.xlu0 %v22
    %v25 = vpop.xlane.xlu0 %24
    %26 = vadd.xlane.f32.xlu0 %v23
    %v27 = vpop.xlane.xlu0 %26
    %v28 = vadd.f32 %v25, %v27
    %v29 = vmul.f32 %v21, 0.03125
    %v30 = vmul.f32 %v28, 0.03125
    %v31 = vmul.f32 %v29, %v29
    %v32 = vsub.f32 %v30, %v31
    %v33 = vmax.f32 %v32, 0.0
    %v34 = vadd.f32 %v33, 1e-05
    %v35 = vrsqrt.pop %v34
    %v36 = vld [vmem:[%s1] sm:$0xff]
    %v37 = vmul.f32 %v36, %v35
    %v38 = vld [vmem:[%s2] sm:$0xff]
    %v39 = vmul.f32 %v29, %v37
    %v40 = vsub.f32 %v38, %v39
    %42 = vset.pattern.permute.xlu0 0
    %43 = vperm.xlu0 %42, %v37
    %v44 = vpop.permute.xlu0 %43
    %v46 = vmul.f32 %v15, %v44
    %v47 = vmul.f32 %v16, %v44
    %49 = vset.pattern.permute.xlu0 0
    %50 = vperm.xlu0 %49, %v40
    %v51 = vpop.permute.xlu0 %50
    %v53 = vadd.f32 %v46, %v51
    %v54 = vadd.f32 %v47, %v51
    %55 = vst [vmem:[#allocation2] sm:$0xff] %v53
    %56 = vst [vmem:[#allocation2 + $0x8] sm:$0xff] %v54
    // Predicated region
    $region14: #{tpu_custom_call.1} parent=1 // pred_check
      _
    $region15: #{tpu_custom_call.1} parent=1 // pred_check_branch
      %58 = sbr.rel (0) target = $region17
    $region16: #{tpu_custom_call.1} parent=1 // pred_region
      %s60 = ssub.s32 256, 256
      %61 = vsyncadd [#allocation3], %s60
      %s62 = sshll.u32 [#allocation2], 4
      %s63 = int_to_ptr.vmem [resolvable:$true] %s62
      %68 = dma.vmem_to_hbm [thread:$0]  %s63, 256, %s3, [#allocation3], 128, 128, 8
    $region17: #{tpu_custom_call.1} parent=1 // pred_fallthru
      _
    // Predicated region
    $region18: #{tpu_custom_call.1} parent=1 // pred_check
      _
    $region19: #{tpu_custom_call.1} parent=1 // pred_check_branch
      %70 = sbr.rel (0) target = $region21
    $region20: #{tpu_custom_call.1} parent=1 // pred_region
      %71 = dma.done [#allocation3], 256
    $region21: #{tpu_custom_call.1} parent=1 // pred_fallthru
      _
    %72 = vsyncpa [#allocation3], 1

</llo_original>
